<compile_context>
chip_gen: v6e
topology: v6e:2x2x1
jax: 0.10.0
libtpu: 0.0.40
codegen_flags: <defaults>
</compile_context>

<pallas_src>
import functools

import jax
import jax.numpy as jnp
from jax.experimental import pallas as pl
from jax.experimental.pallas import tpu as pltpu

BN_EPS = 1e-5


def _pad_to(n, m):
    return ((n + m - 1) // m) * m


def _vmem_capacity_bytes():
    """Per-chip VMEM capacity, with a conservative fallback (v7x per-TC)."""
    try:
        return int(pltpu.get_tpu_info().vmem_capacity_bytes)
    except Exception:
        return 64 * 1024 * 1024


def _mlp_kernel(x_ref, w_ref, vec_ref, o_ref, *, in_dim, in_dim_p,
                h1p, h2p, outp):
    """Fused forward pass, whole batch resident in VMEM (no grid).

    x_ref   : (B, in_dim)                         f32 (cast to bf16 in-kernel)
    w_ref   : (in_dim_p + h1p + h2p, fmax)        bf16 packed [w1 | w2 | w3]
    vec_ref : (5, fmax)                           f32 rows = [g1,be1,g2,be2,b3]
    o_ref   : (B, outp)                           f32, lane-dense store
    """
    r1 = in_dim_p
    r2 = in_dim_p + h1p

    def bn_relu(z, g, be):
        # Single-pass biased batch stats + folded affine:
        #   out = relu(z * scale + shift), scale/shift per-channel (1, F).
        mu = jnp.mean(z, axis=0, keepdims=True)
        var = jnp.maximum(
            jnp.mean(z * z, axis=0, keepdims=True) - mu * mu, 0.0)
        scale = g * jax.lax.rsqrt(var + BN_EPS)    # rsqrt -> EUP slot
        shift = be - mu * scale
        return jnp.maximum(z * scale + shift, 0.0)

    # layer1: Linear (bias omitted: exactly cancelled by batch-stat BN)
    #         + BatchNorm1d + ReLU
    x = x_ref[...].astype(jnp.bfloat16)            # VPU cast, hidden under DMA
    z1 = jnp.dot(x, w_ref[0:in_dim, 0:h1p],
                 preferred_element_type=jnp.float32)
    h1 = bn_relu(z1, vec_ref[0:1, 0:h1p], vec_ref[1:2, 0:h1p])

    # layer2: same structure
    z2 = jnp.dot(h1.astype(jnp.bfloat16), w_ref[r1:r1 + h1p, 0:h2p],
                 preferred_element_type=jnp.float32)
    h2 = bn_relu(z2, vec_ref[2:3, 0:h2p], vec_ref[3:4, 0:h2p])

    # layer3: plain Linear (bias kept)
    o_ref[...] = (jnp.dot(h2.astype(jnp.bfloat16), w_ref[r2:r2 + h2p, 0:outp],
                          preferred_element_type=jnp.float32)
                  + vec_ref[4:5, 0:outp]).astype(o_ref.dtype)


def prepare_params(params):
    """One-time preprocessing of torch-style params into kernel buffers.

    params = (w1, b1, g1, be1, w2, b2, g2, be2, w3, b3), f32, with Linear
    weights stored transposed, i.e. W has shape (fan_in, fan_out).

    Returns (wpack, vec, dims): a packed bf16 weight slab, a packed f32
    per-channel-vector slab, and a static tuple of dimensions.
    """
    (w1, b1, g1, be1, w2, b2, g2, be2, w3, b3) = params
    del b1, b2  # mathematically dead: cancelled by batch-stat BatchNorm

    in_dim, h1 = w1.shape
    h2 = w2.shape[1]
    out_dim = w3.shape[1]
    in_dim_p = _pad_to(in_dim, 16)                  # bf16 sublane packing
    h1p, h2p, outp = _pad_to(h1, 128), _pad_to(h2, 128), _pad_to(out_dim, 128)
    fmax = max(h1p, h2p, outp)

    # Lane-dense bf16 weight slab, rows [w1 | w2 | w3] (zero padding -> exact).
    wpack = jnp.zeros((in_dim_p + h1p + h2p, fmax), jnp.bfloat16)
    wpack = wpack.at[0:in_dim, 0:h1].set(w1.astype(jnp.bfloat16))
    wpack = wpack.at[in_dim_p:in_dim_p + h1, 0:h2].set(w2.astype(jnp.bfloat16))
    wpack = wpack.at[in_dim_p + h1p:in_dim_p + h1p + h2, 0:out_dim].set(
        w3.astype(jnp.bfloat16))

    # Five tiny per-channel vectors packed into one (5, fmax) f32 slab
    # (padded entries 0, which keeps padded channels exactly 0).
    def _row(v, n):
        return jnp.zeros((1, fmax), jnp.float32).at[:, :n].set(
            v.reshape(1, n).astype(jnp.float32))

    vec = jnp.concatenate(
        [_row(g1, h1), _row(be1, h1), _row(g2, h2), _row(be2, h2),
         _row(b3, out_dim)], axis=0)

    dims = (in_dim, in_dim_p, h1p, h2p, outp, out_dim)
    return wpack, vec, dims


def net_forward(x, wpack, vec, dims):
    """Pallas forward pass on pre-packed params (see prepare_params)."""
    in_dim, in_dim_p, h1p, h2p, outp, out_dim = dims
    batch = x.shape[0]
    assert x.shape[1] == in_dim

    # VMEM budget: whole batch + weights resident, no grid => no double-
    # buffering multiplier.  Cap at ~75% of physical VMEM (hardware-derived,
    # so the same code is correct and maximal on v5e/v6e/v7x).
    vmem_need = (x.size * 4 + wpack.size * 2 + vec.size * 4
                 + batch * (h1p + h2p + outp) * 4 + batch * outp * 4)
    vmem_cap = int(_vmem_capacity_bytes() * 0.75)
    if vmem_need > vmem_cap:
        # TODO(synk): add a batch-tiled large-batch path (two-pass BN stats
        # kernel + apply kernel, or in-kernel chunked sum/sum-sq over HBM via
        # manual make_async_copy double-buffering).
        raise ValueError(
            f"batch={batch} exceeds the whole-batch-in-VMEM ceiling "
            f"({vmem_need} > {vmem_cap} bytes); tile the batch dimension.")
    vmem_limit = min(vmem_cap, max(vmem_need + (4 << 20), 16 << 20))

    # Advisory cost estimate for XLA's scheduler.
    flops = 2 * batch * (in_dim * h1p + h1p * h2p + h2p * outp)
    bytes_accessed = (x.size * 4 + wpack.size * 2 + vec.size * 4
                      + batch * outp * 4)
    cost = pl.CostEstimate(flops=flops, transcendentals=h1p + h2p,
                           bytes_accessed=bytes_accessed)

    kernel = functools.partial(_mlp_kernel, in_dim=in_dim, in_dim_p=in_dim_p,
                               h1p=h1p, h2p=h2p, outp=outp)
    vmem = pl.BlockSpec(memory_space=pltpu.MemorySpace.VMEM)
    out_padded = pl.pallas_call(
        kernel,
        out_shape=jax.ShapeDtypeStruct((batch, outp), jnp.float32),
        in_specs=[vmem, vmem, vmem],
        out_specs=vmem,
        cost_estimate=cost,
        compiler_params=pltpu.CompilerParams(vmem_limit_bytes=int(vmem_limit)),
    )(x, wpack, vec)

    if outp == out_dim:
        return out_padded
    # Padded output channels are exactly 0 (zero weights + zero bias); slice
    # them off to keep the torch-faithful output shape.
    return out_padded[:, :out_dim]


def init_params(key, in_dim, n_hidden_1, n_hidden_2, out_dim):
    """Deterministic init mimicking torch.nn.Linear (uniform +-1/sqrt(fan_in)).

    Linear weights are stored as (fan_in, fan_out). BatchNorm gamma=1, beta=0.
    """
    k1, k2, k3, k4, k5, k6 = jax.random.split(key, 6)

    def lin(kw, kb, fan_in, fan_out):
        bound = 1.0 / jnp.sqrt(jnp.float32(fan_in))
        w = jax.random.uniform(kw, (fan_in, fan_out), jnp.float32, -bound, bound)
        b = jax.random.uniform(kb, (1, fan_out), jnp.float32, -bound, bound)
        return w, b

    w1, b1 = lin(k1, k2, in_dim, n_hidden_1)
    w2, b2 = lin(k3, k4, n_hidden_1, n_hidden_2)
    w3, b3 = lin(k5, k6, n_hidden_2, out_dim)
    g1 = jnp.ones((1, n_hidden_1), jnp.float32)
    be1 = jnp.zeros((1, n_hidden_1), jnp.float32)
    g2 = jnp.ones((1, n_hidden_2), jnp.float32)
    be2 = jnp.zeros((1, n_hidden_2), jnp.float32)
    return (w1, b1, g1, be1, w2, b2, g2, be2, w3, b3)


def net_forward_ref(x, params, matmul_dtype=jnp.float32):
    """Pure-JAX, torch-faithful reference (biases kept, two-pass BN stats)."""
    (w1, b1, g1, be1, w2, b2, g2, be2, w3, b3) = params

    def dot(a, b):
        return jnp.dot(a.astype(matmul_dtype), b.astype(matmul_dtype),
                       preferred_element_type=jnp.float32)

    def block(z, g, be):
        mu = jnp.mean(z, axis=0, keepdims=True)
        var = jnp.mean((z - mu) ** 2, axis=0, keepdims=True)  # biased variance
        return jnp.maximum((z - mu) / jnp.sqrt(var + BN_EPS) * g + be, 0.0)

    h = block(dot(x, w1) + b1, g1, be1)
    h = block(dot(h, w2) + b2, g2, be2)
    return dot(h, w3) + b3


if __name__ == "__main__":
    key = jax.random.PRNGKey(0)
    kx, kp = jax.random.split(key)

    batch, in_dim, n_hidden_1, n_hidden_2, out_dim = 8, 32, 64, 64, 16
    x = jax.random.normal(kx, (batch, in_dim), jnp.float32)
    params = init_params(kp, in_dim, n_hidden_1, n_hidden_2, out_dim)

    # One-time preprocessing (outside the per-call path).
    wpack, vec, dims = prepare_params(params)
    wpack, vec = jax.block_until_ready((wpack, vec))

    fwd = jax.jit(net_forward, static_argnums=3)
    out = jax.block_until_ready(fwd(x, wpack, vec, dims))
    assert out.shape == (batch, out_dim)

    # Tight check vs a reference with the same numerics (bf16 matmul operands).
    ref_bf16 = net_forward_ref(x, params, matmul_dtype=jnp.bfloat16)
    assert jnp.allclose(out, ref_bf16, atol=1e-2, rtol=1e-2), \
        "mismatch vs bf16-operand reference"

    # Loose semantic check vs the full-f32 torch-faithful reference.
    ref_f32 = net_forward_ref(x, params)
    assert jnp.allclose(out, ref_f32, atol=1e-1, rtol=1e-1), \
        "mismatch vs f32 reference"

    print("KERNEL_OK")
</pallas_src>

<mosaic_0001>
module attributes {stable_mosaic.version = 11 : i64} {
  func.func @_mlp_kernel(%arg0: memref<8x32xf32, #tpu.memory_space<vmem>>, %arg1: memref<288x128xbf16, #tpu.memory_space<vmem>>, %arg2: memref<5x128xf32, #tpu.memory_space<vmem>>, %arg3: memref<8x128xf32, #tpu.memory_space<vmem>>) attributes {dimension_semantics = [], scalar_prefetch = 0 : i64, scratch_operands = 0 : i64, tpu.core_type = #tpu.core_type<tc>} {
    %c0 = arith.constant 0 : index
    %c0_0 = arith.constant 0 : index
    %0 = vector.load %arg0[%c0, %c0_0] : memref<8x32xf32, #tpu.memory_space<vmem>>, vector<8x32xf32>
    %1 = arith.truncf %0 : vector<8x32xf32> to vector<8x32xbf16>
    %c0_1 = arith.constant 0 : index
    %c0_2 = arith.constant 0 : index
    %2 = vector.load %arg1[%c0_1, %c0_2] : memref<288x128xbf16, #tpu.memory_space<vmem>>, vector<32x128xbf16>
    %cst = arith.constant dense<0.000000e+00> : vector<8x128xf32>
    %3 = tpu.matmul %1, %2, %cst {dimension_numbers = #tpu.dot_dimension_numbers<[1], [0], [0], [1], [0, 0, 1, 1], [], []>} : vector<8x32xbf16>, vector<32x128xbf16>, vector<8x128xf32> -> vector<8x128xf32>
    %c0_3 = arith.constant 0 : index
    %c0_4 = arith.constant 0 : index
    %4 = vector.load %arg2[%c0_3, %c0_4] : memref<5x128xf32, #tpu.memory_space<vmem>>, vector<1x128xf32>
    %c1 = arith.constant 1 : index
    %c0_5 = arith.constant 0 : index
    %5 = vector.load %arg2[%c1, %c0_5] : memref<5x128xf32, #tpu.memory_space<vmem>>, vector<1x128xf32>
    %cst_6 = arith.constant dense<0.000000e+00> : vector<128xf32>
    %6 = vector.multi_reduction <add>, %3, %cst_6 [0] : vector<8x128xf32> to vector<128xf32>
    %7 = vector.shape_cast %6 : vector<128xf32> to vector<1x128xf32>
    %cst_7 = arith.constant 8.000000e+00 : f32
    %8 = vector.broadcast %cst_7 : f32 to vector<1x128xf32>
    %9 = arith.divf %7, %8 : vector<1x128xf32>
    %10 = arith.mulf %3, %3 : vector<8x128xf32>
    %cst_8 = arith.constant dense<0.000000e+00> : vector<128xf32>
    %11 = vector.multi_reduction <add>, %10, %cst_8 [0] : vector<8x128xf32> to vector<128xf32>
    %12 = vector.shape_cast %11 : vector<128xf32> to vector<1x128xf32>
    %cst_9 = arith.constant 8.000000e+00 : f32
    %13 = vector.broadcast %cst_9 : f32 to vector<1x128xf32>
    %14 = arith.divf %12, %13 : vector<1x128xf32>
    %15 = arith.mulf %9, %9 : vector<1x128xf32>
    %16 = arith.subf %14, %15 : vector<1x128xf32>
    %cst_10 = arith.constant 0.000000e+00 : f32
    %17 = vector.broadcast %cst_10 : f32 to vector<1x128xf32>
    %18 = arith.maximumf %16, %17 : vector<1x128xf32>
    %cst_11 = arith.constant 9.99999974E-6 : f32
    %19 = vector.broadcast %cst_11 : f32 to vector<1x128xf32>
    %20 = arith.addf %18, %19 : vector<1x128xf32>
    %21 = math.rsqrt %20 : vector<1x128xf32>
    %22 = arith.mulf %4, %21 : vector<1x128xf32>
    %23 = arith.mulf %9, %22 : vector<1x128xf32>
    %24 = arith.subf %5, %23 : vector<1x128xf32>
    %25 = vector.broadcast %22 : vector<1x128xf32> to vector<8x128xf32>
    %26 = arith.mulf %3, %25 : vector<8x128xf32>
    %27 = vector.broadcast %24 : vector<1x128xf32> to vector<8x128xf32>
    %28 = arith.addf %26, %27 : vector<8x128xf32>
    %cst_12 = arith.constant 0.000000e+00 : f32
    %29 = vector.broadcast %cst_12 : f32 to vector<8x128xf32>
    %30 = arith.maximumf %28, %29 : vector<8x128xf32>
    %31 = arith.truncf %30 : vector<8x128xf32> to vector<8x128xbf16>
    %c32 = arith.constant 32 : index
    %c0_13 = arith.constant 0 : index
    %32 = vector.load %arg1[%c32, %c0_13] : memref<288x128xbf16, #tpu.memory_space<vmem>>, vector<128x128xbf16>
    %cst_14 = arith.constant dense<0.000000e+00> : vector<8x128xf32>
    %33 = tpu.matmul %31, %32, %cst_14 {dimension_numbers = #tpu.dot_dimension_numbers<[1], [0], [0], [1], [0, 0, 1, 1], [], []>} : vector<8x128xbf16>, vector<128x128xbf16>, vector<8x128xf32> -> vector<8x128xf32>
    %c2 = arith.constant 2 : index
    %c0_15 = arith.constant 0 : index
    %34 = vector.load %arg2[%c2, %c0_15] : memref<5x128xf32, #tpu.memory_space<vmem>>, vector<1x128xf32>
    %c3 = arith.constant 3 : index
    %c0_16 = arith.constant 0 : index
    %35 = vector.load %arg2[%c3, %c0_16] : memref<5x128xf32, #tpu.memory_space<vmem>>, vector<1x128xf32>
    %cst_17 = arith.constant dense<0.000000e+00> : vector<128xf32>
    %36 = vector.multi_reduction <add>, %33, %cst_17 [0] : vector<8x128xf32> to vector<128xf32>
    %37 = vector.shape_cast %36 : vector<128xf32> to vector<1x128xf32>
    %cst_18 = arith.constant 8.000000e+00 : f32
    %38 = vector.broadcast %cst_18 : f32 to vector<1x128xf32>
    %39 = arith.divf %37, %38 : vector<1x128xf32>
    %40 = arith.mulf %33, %33 : vector<8x128xf32>
    %cst_19 = arith.constant dense<0.000000e+00> : vector<128xf32>
    %41 = vector.multi_reduction <add>, %40, %cst_19 [0] : vector<8x128xf32> to vector<128xf32>
    %42 = vector.shape_cast %41 : vector<128xf32> to vector<1x128xf32>
    %cst_20 = arith.constant 8.000000e+00 : f32
    %43 = vector.broadcast %cst_20 : f32 to vector<1x128xf32>
    %44 = arith.divf %42, %43 : vector<1x128xf32>
    %45 = arith.mulf %39, %39 : vector<1x128xf32>
    %46 = arith.subf %44, %45 : vector<1x128xf32>
    %cst_21 = arith.constant 0.000000e+00 : f32
    %47 = vector.broadcast %cst_21 : f32 to vector<1x128xf32>
    %48 = arith.maximumf %46, %47 : vector<1x128xf32>
    %cst_22 = arith.constant 9.99999974E-6 : f32
    %49 = vector.broadcast %cst_22 : f32 to vector<1x128xf32>
    %50 = arith.addf %48, %49 : vector<1x128xf32>
    %51 = math.rsqrt %50 : vector<1x128xf32>
    %52 = arith.mulf %34, %51 : vector<1x128xf32>
    %53 = arith.mulf %39, %52 : vector<1x128xf32>
    %54 = arith.subf %35, %53 : vector<1x128xf32>
    %55 = vector.broadcast %52 : vector<1x128xf32> to vector<8x128xf32>
    %56 = arith.mulf %33, %55 : vector<8x128xf32>
    %57 = vector.broadcast %54 : vector<1x128xf32> to vector<8x128xf32>
    %58 = arith.addf %56, %57 : vector<8x128xf32>
    %cst_23 = arith.constant 0.000000e+00 : f32
    %59 = vector.broadcast %cst_23 : f32 to vector<8x128xf32>
    %60 = arith.maximumf %58, %59 : vector<8x128xf32>
    %61 = arith.truncf %60 : vector<8x128xf32> to vector<8x128xbf16>
    %c160 = arith.constant 160 : index
    %c0_24 = arith.constant 0 : index
    %62 = vector.load %arg1[%c160, %c0_24] : memref<288x128xbf16, #tpu.memory_space<vmem>>, vector<128x128xbf16>
    %cst_25 = arith.constant dense<0.000000e+00> : vector<8x128xf32>
    %63 = tpu.matmul %61, %62, %cst_25 {dimension_numbers = #tpu.dot_dimension_numbers<[1], [0], [0], [1], [0, 0, 1, 1], [], []>} : vector<8x128xbf16>, vector<128x128xbf16>, vector<8x128xf32> -> vector<8x128xf32>
    %c4 = arith.constant 4 : index
    %c0_26 = arith.constant 0 : index
    %64 = vector.load %arg2[%c4, %c0_26] : memref<5x128xf32, #tpu.memory_space<vmem>>, vector<1x128xf32>
    %65 = vector.broadcast %64 : vector<1x128xf32> to vector<8x128xf32>
    %66 = arith.addf %63, %65 : vector<8x128xf32>
    %c0_27 = arith.constant 0 : index
    %c0_28 = arith.constant 0 : index
    %67 = vector.load %arg3[%c0_27, %c0_28] : memref<8x128xf32, #tpu.memory_space<vmem>>, vector<8x128xf32>
    tpu.vector_store %arg3[%c0_27, %c0_28], %66 {strides = array<i32>} : memref<8x128xf32, #tpu.memory_space<vmem>>, vector<8x128xf32>,
    return
  }
}

</mosaic_0001>

<llo_original>
// kernel: net_forward.1
$region0: #{net_forward.1}
  #allocation0 [shape = 'u32[]', space=smem, size = 0x4, offset = 0x4, fixed_abs, tag = 'smem constant byte address 0x4 - core index']
  #allocation1 [shape = 'u32[144,128]{1,0:T(1,128)}', space=vmem, size = 0x12000, scoped, tag = 'internal scratch']
  %s0 = inlined_call_operand.hbm [shape: f32[8,32], index: 0, kind: input, shape index: {}]
  %s1 = inlined_call_operand.hbm [shape: bf16[288,128], index: 1, kind: input, shape index: {}]
  %s2 = inlined_call_operand.hbm [shape: f32[5,128], index: 2, kind: input, shape index: {}]
  %s3 = inlined_call_operand.hbm [shape: f32[8,128], index: 3, kind: output, shape index: {}]
  %s4 = sld [smem:[#allocation0]]
  $region34: #{net_forward.1} parent=0
    _
  %s6 = ssub.s32 1, %s4
  %s7 = scalar_select 0, %s6, %s4
  $region1: #{net_forward.1} parent=0
    #allocation2 [shape = 'u8[4096]{0}', space=vmem, size = 0x1000, scoped, tag = 'input window, operand 0, single buffered']
    #allocation3 [shape = 's32[1]{0}', space=sflag, size = 0x4, scoped, tag = 'scoped memory for net_forward.1']
    #allocation4 [shape = 's32[1]{0}', space=sflag, size = 0x4, scoped, tag = 'scoped memory for net_forward.1']
    #allocation5 [shape = 'u8[73728]{0}', space=vmem, size = 0x12000, scoped, tag = 'input window, operand 1, single buffered']
    #allocation6 [shape = 's32[1]{0}', space=sflag, size = 0x4, scoped, tag = 'scoped memory for net_forward.1']
    #allocation7 [shape = 'u8[4096]{0}', space=vmem, size = 0x1000, scoped, tag = 'input window, operand 2, single buffered']
    #allocation8 [shape = 'u8[4096]{0}', space=vmem, size = 0x1000, scoped, tag = 'output window, operand 0, single buffered']
    %8 = vsyncpa [#allocation3], 0
    %9 = vsyncpa [#allocation6], 0
    %10 = vsyncpa [#allocation4], 0
    // Predicated region
    $region2: #{net_forward.1} parent=1 // pred_check
      _
    $region3: #{net_forward.1} parent=1 // pred_check_branch
      %12 = sbr.rel (0) target = $region5
    $region4: #{net_forward.1} parent=1 // pred_region
      %s14 = ssub.s32 128, 128
      %15 = vsyncadd [#allocation3], %s14
      %s17 = sshll.u32 [#allocation2], 4
      %s18 = int_to_ptr.vmem [resolvable:$true] %s17
      %20 = dma.hbm_to_vmem [thread:$0]  %s0, 128, %s18, [#allocation3]
    $region5: #{net_forward.1} parent=1 // pred_fallthru
      _
    // Predicated region
    $region6: #{net_forward.1} parent=1 // pred_check
      _
    $region7: #{net_forward.1} parent=1 // pred_check_branch
      %22 = sbr.rel (0) target = $region9
    $region8: #{net_forward.1} parent=1 // pred_region
      %s24 = ssub.s32 2304, 2304
      %25 = vsyncadd [#allocation6], %s24
      %s26 = sshll.u32 [#allocation5], 4
      %s27 = int_to_ptr.vmem [resolvable:$true] %s26
      %32 = dma.hbm_to_vmem [thread:$0]  %s1, 2304, %s27, [#allocation6], 64, 64, 4
    $region9: #{net_forward.1} parent=1 // pred_fallthru
      _
    // Predicated region
    $region10: #{net_forward.1} parent=1 // pred_check
      _
    $region11: #{net_forward.1} parent=1 // pred_check_branch
      %34 = sbr.rel (0) target = $region13
    $region12: #{net_forward.1} parent=1 // pred_region
      %s36 = ssub.s32 128, 128
      %37 = vsyncadd [#allocation6], %s36
      %s39 = sshll.u32 [#allocation7], 4
      %s40 = int_to_ptr.vmem [resolvable:$true] %s39
      %42 = dma.hbm_to_vmem [thread:$0]  %s2, 128, %s40, [#allocation6]
    $region13: #{net_forward.1} parent=1 // pred_fallthru
      _
    // Predicated region
    $region14: #{net_forward.1} parent=1 // pred_check
      _
    $region15: #{net_forward.1} parent=1 // pred_check_branch
      %44 = sbr.rel (0) target = $region17
    $region16: #{net_forward.1} parent=1 // pred_region
      %45 = dma.done [#allocation3], 128
    $region17: #{net_forward.1} parent=1 // pred_fallthru
      _
    // Predicated region
    $region18: #{net_forward.1} parent=1 // pred_check
      _
    $region19: #{net_forward.1} parent=1 // pred_check_branch
      %47 = sbr.rel (0) target = $region21
    $region20: #{net_forward.1} parent=1 // pred_region
      %48 = dma.done [#allocation6], 2304
    $region21: #{net_forward.1} parent=1 // pred_fallthru
      _
    // Predicated region
    $region22: #{net_forward.1} parent=1 // pred_check
      _
    $region23: #{net_forward.1} parent=1 // pred_check_branch
      %50 = sbr.rel (0) target = $region25
    $region24: #{net_forward.1} parent=1 // pred_region
      %51 = dma.done [#allocation6], 128
    $region25: #{net_forward.1} parent=1 // pred_fallthru
      _
    %v53 = vld [vmem:[#allocation2] sm:$0xff]
    %v54 = vpack.c.bf16 %v53, %v53
    %v55 = vld [vmem:[#allocation5] sm:$0xf]
    %v56 = vld [vmem:[#allocation5 + $0x4] sm:$0xf]
    %v57 = vld [vmem:[#allocation5 + $0x8] sm:$0xf]
    %v58 = vld [vmem:[#allocation5 + $0xc] sm:$0xf]
    %v63 = vunpack.c.l.b16 %v55
    %v64 = vunpack.c.l.b16 %v56
    %v65 = vunpack.c.l.b16 %v57
    %v66 = vunpack.c.l.b16 %v58
    %v67 = vpack.c.b16 %v64, %v63
    %v68 = vpack.c.b16 %v66, %v65
    %vm71 = vcmask 261120
    %v73 = vsel %vm71, %v54, 0
    %75 = vmatprep.subr.bf16.mxu0 0
    %76 = vmatpush1.bf16.msra.mxu0 0
    %77 = vmatprep.subr.bf16.mxu0 0
    %78 = vmatpush1.bf16.msra.mxu0 0
    %79 = vmatprep.subr.bf16.mxu0 0
    %80 = vmatpush1.bf16.msra.mxu0 0
    %81 = vmatprep.subr.bf16.mxu0 0
    %82 = vmatpush1.bf16.msra.mxu0 0
    %83 = vmatprep.subr.bf16.mxu0 0
    %84 = vmatpush1.bf16.msra.mxu0 0
    %85 = vmatprep.subr.bf16.mxu0 0
    %86 = vmatpush1.bf16.msra.mxu0 0
    %87 = vmatprep.subr.bf16.mxu0 0
    %88 = vmatpush1.bf16.msra.mxu0 %v68
    %89 = vmatprep.subr.bf16.mxu0 0
    %90 = vmatpush1.bf16.msra.mxu0 %v67
    %91 = vmatprep.subr.bf16.mxu0 0
    %92 = vmatpush2.bf16.msra.mxu0 0
    %93 = vmatprep.subr.bf16.mxu0 0
    %94 = vmatpush2.bf16.msra.mxu0 0
    %95 = vmatprep.subr.bf16.mxu0 0
    %96 = vmatpush2.bf16.msra.mxu0 0
    %97 = vmatprep.subr.bf16.mxu0 0
    %98 = vmatpush2.bf16.msra.mxu0 0
    %99 = vmatprep.subr.bf16.mxu0 0
    %100 = vmatpush2.bf16.msra.mxu0 0
    %101 = vmatprep.subr.bf16.mxu0 0
    %102 = vmatpush2.bf16.msra.mxu0 0
    %103 = vmatprep.subr.bf16.mxu0 0
    %104 = vmatpush2.bf16.msra.mxu0 0
    %105 = vmatprep.subr.bf16.mxu0 0
    %106 = vmatpush2.bf16.msra.mxu0 0
    %107 = vmatprep.mubr.bf16.mxu0 0
    %108 = vmatmul.mubr.bf16.gmra.mxu0 %v73
    %v109 = vpop.f32.mrf.mxu0
    %v110 = vadd.f32 0.0, %v109
    %v111 = vpop.f32.mrf.mxu0
    %v112 = vpop.f32.mrf.mxu0
    %v113 = vpop.f32.mrf.mxu0
    %114 = vdwg.mxu0
    %v115 = vld [vmem:[#allocation7] sm:$0x1]
    %v116 = vld [vmem:[#allocation7 + $0x1] sm:$0x1]
    %v117 = vrot.slane %v110, 4
    %v118 = vadd.f32 %v110, %v117
    %v119 = vrot.slane %v118, 2
    %v120 = vadd.f32 %v118, %v119
    %v121 = vrot.slane %v120, 1
    %v122 = vadd.f32 %v120, %v121
    %v123 = vrcp.pop 8.0
    %v124 = vmul.f32 %v122, %v123
    %v125 = vmul.f32 %v110, %v110
    %v126 = vrot.slane %v125, 4
    %v127 = vadd.f32 %v125, %v126
    %v128 = vrot.slane %v127, 2
    %v129 = vadd.f32 %v127, %v128
    %v130 = vrot.slane %v129, 1
    %v131 = vadd.f32 %v129, %v130
    %v132 = vmul.f32 %v131, %v123
    %v133 = vmul.f32 %v124, %v124
    %v134 = vsub.f32 %v132, %v133
    %v135 = vmax.f32 %v134, 0.0
    %v136 = vadd.f32 %v135, 1e-05
    %v137 = vrsqrt.pop %v136
    %v138 = vmul.f32 %v115, %v137
    %v139 = vmul.f32 %v124, %v138
    %v140 = vsub.f32 %v116, %v139
    %v141 = vlaneseq
    %v142 = vshrl.u32 %v141, 7
    %v143 = vsub.s32 0, %v142
    %v144 = vrot.slane %v138, %v143
    %v145 = vmul.f32 %v110, %v144
    %v146 = vlaneseq
    %v147 = vshrl.u32 %v146, 7
    %v148 = vsub.s32 0, %v147
    %v149 = vrot.slane %v140, %v148
    %v150 = vadd.f32 %v145, %v149
    %v151 = vmax.f32 %v150, 0.0
    %v152 = vpack.c.bf16 %v151, %v151
    %v153 = vld [vmem:[#allocation5 + $0x10] sm:$0xf]
    %v154 = vld [vmem:[#allocation5 + $0x14] sm:$0xf]
    %v155 = vld [vmem:[#allocation5 + $0x18] sm:$0xf]
    %v156 = vld [vmem:[#allocation5 + $0x1c] sm:$0xf]
    %v157 = vld [vmem:[#allocation5 + $0x20] sm:$0xf]
    %v158 = vld [vmem:[#allocation5 + $0x24] sm:$0xf]
    %v159 = vld [vmem:[#allocation5 + $0x28] sm:$0xf]
    %v160 = vld [vmem:[#allocation5 + $0x2c] sm:$0xf]
    %v161 = vld [vmem:[#allocation5 + $0x30] sm:$0xf]
    %v162 = vld [vmem:[#allocation5 + $0x34] sm:$0xf]
    %v163 = vld [vmem:[#allocation5 + $0x38] sm:$0xf]
    %v164 = vld [vmem:[#allocation5 + $0x3c] sm:$0xf]
    %v165 = vld [vmem:[#allocation5 + $0x40] sm:$0xf]
    %v166 = vld [vmem:[#allocation5 + $0x44] sm:$0xf]
    %v167 = vld [vmem:[#allocation5 + $0x48] sm:$0xf]
    %v168 = vld [vmem:[#allocation5 + $0x4c] sm:$0xf]
    %v185 = vunpack.c.l.b16 %v153
    %v186 = vunpack.c.l.b16 %v154
    %v187 = vunpack.c.l.b16 %v155
    %v188 = vunpack.c.l.b16 %v156
    %v189 = vunpack.c.l.b16 %v157
    %v190 = vunpack.c.l.b16 %v158
    %v191 = vunpack.c.l.b16 %v159
    %v192 = vunpack.c.l.b16 %v160
    %v193 = vunpack.c.l.b16 %v161
    %v194 = vunpack.c.l.b16 %v162
    %v195 = vunpack.c.l.b16 %v163
    %v196 = vunpack.c.l.b16 %v164
    %v197 = vunpack.c.l.b16 %v165
    %v198 = vunpack.c.l.b16 %v166
    %v199 = vunpack.c.l.b16 %v167
    %v200 = vunpack.c.l.b16 %v168
    %v201 = vpack.c.b16 %v186, %v185
    %v202 = vpack.c.b16 %v188, %v187
    %v203 = vpack.c.b16 %v190, %v189
    %v204 = vpack.c.b16 %v192, %v191
    %v205 = vpack.c.b16 %v194, %v193
    %v206 = vpack.c.b16 %v196, %v195
    %v207 = vpack.c.b16 %v198, %v197
    %v208 = vpack.c.b16 %v200, %v199
    %217 = vmatprep.subr.bf16.mxu0 0
    %218 = vmatpush1.bf16.msra.mxu0 %v208
    %219 = vmatprep.subr.bf16.mxu0 0
    %220 = vmatpush1.bf16.msra.mxu0 %v207
    %221 = vmatprep.subr.bf16.mxu0 0
    %222 = vmatpush1.bf16.msra.mxu0 %v206
    %223 = vmatprep.subr.bf16.mxu0 0
    %224 = vmatpush1.bf16.msra.mxu0 %v205
    %225 = vmatprep.subr.bf16.mxu0 0
    %226 = vmatpush1.bf16.msra.mxu0 %v204
    %227 = vmatprep.subr.bf16.mxu0 0
    %228 = vmatpush1.bf16.msra.mxu0 %v203
    %229 = vmatprep.subr.bf16.mxu0 0
    %230 = vmatpush1.bf16.msra.mxu0 %v202
    %231 = vmatprep.subr.bf16.mxu0 0
    %232 = vmatpush1.bf16.msra.mxu0 %v201
    %233 = vmatprep.subr.bf16.mxu0 0
    %234 = vmatpush2.bf16.msra.mxu0 0
    %235 = vmatprep.subr.bf16.mxu0 0
    %236 = vmatpush2.bf16.msra.mxu0 0
    %237 = vmatprep.subr.bf16.mxu0 0
    %238 = vmatpush2.bf16.msra.mxu0 0
    %239 = vmatprep.subr.bf16.mxu0 0
    %240 = vmatpush2.bf16.msra.mxu0 0
    %241 = vmatprep.subr.bf16.mxu0 0
    %242 = vmatpush2.bf16.msra.mxu0 0
    %243 = vmatprep.subr.bf16.mxu0 0
    %244 = vmatpush2.bf16.msra.mxu0 0
    %245 = vmatprep.subr.bf16.mxu0 0
    %246 = vmatpush2.bf16.msra.mxu0 0
    %247 = vmatprep.subr.bf16.mxu0 0
    %248 = vmatpush2.bf16.msra.mxu0 0
    %249 = vmatprep.mubr.bf16.mxu0 0
    %250 = vmatmul.mubr.bf16.gmra.mxu0 %v152
    %v251 = vpop.f32.mrf.mxu0
    %v252 = vadd.f32 0.0, %v251
    %v253 = vpop.f32.mrf.mxu0
    %v254 = vpop.f32.mrf.mxu0
    %v255 = vpop.f32.mrf.mxu0
    %256 = vdwg.mxu0
    %v257 = vld [vmem:[#allocation7 + $0x2] sm:$0x1]
    %v258 = vld [vmem:[#allocation7 + $0x3] sm:$0x1]
    %v259 = vrot.slane %v252, 4
    %v260 = vadd.f32 %v252, %v259
    %v261 = vrot.slane %v260, 2
    %v262 = vadd.f32 %v260, %v261
    %v263 = vrot.slane %v262, 1
    %v264 = vadd.f32 %v262, %v263
    %v265 = vmul.f32 %v264, %v123
    %v266 = vmul.f32 %v252, %v252
    %v267 = vrot.slane %v266, 4
    %v268 = vadd.f32 %v266, %v267
    %v269 = vrot.slane %v268, 2
    %v270 = vadd.f32 %v268, %v269
    %v271 = vrot.slane %v270, 1
    %v272 = vadd.f32 %v270, %v271
    %v273 = vmul.f32 %v272, %v123
    %v274 = vmul.f32 %v265, %v265
    %v275 = vsub.f32 %v273, %v274
    %v276 = vmax.f32 %v275, 0.0
    %v277 = vadd.f32 %v276, 1e-05
    %v278 = vrsqrt.pop %v277
    %v279 = vmul.f32 %v257, %v278
    %v280 = vmul.f32 %v265, %v279
    %v281 = vsub.f32 %v258, %v280
    %v282 = vlaneseq
    %v283 = vshrl.u32 %v282, 7
    %v284 = vsub.s32 0, %v283
    %v285 = vrot.slane %v279, %v284
    %v286 = vmul.f32 %v252, %v285
    %v287 = vlaneseq
    %v288 = vshrl.u32 %v287, 7
    %v289 = vsub.s32 0, %v288
    %v290 = vrot.slane %v281, %v289
    %v291 = vadd.f32 %v286, %v290
    %v292 = vmax.f32 %v291, 0.0
    %v293 = vpack.c.bf16 %v292, %v292
    %v294 = vld [vmem:[#allocation5 + $0x50] sm:$0xf]
    %v295 = vld [vmem:[#allocation5 + $0x54] sm:$0xf]
    %v296 = vld [vmem:[#allocation5 + $0x58] sm:$0xf]
    %v297 = vld [vmem:[#allocation5 + $0x5c] sm:$0xf]
    %v298 = vld [vmem:[#allocation5 + $0x60] sm:$0xf]
    %v299 = vld [vmem:[#allocation5 + $0x64] sm:$0xf]
    %v300 = vld [vmem:[#allocation5 + $0x68] sm:$0xf]
    %v301 = vld [vmem:[#allocation5 + $0x6c] sm:$0xf]
    %v302 = vld [vmem:[#allocation5 + $0x70] sm:$0xf]
    %v303 = vld [vmem:[#allocation5 + $0x74] sm:$0xf]
    %v304 = vld [vmem:[#allocation5 + $0x78] sm:$0xf]
    %v305 = vld [vmem:[#allocation5 + $0x7c] sm:$0xf]
    %v306 = vld [vmem:[#allocation5 + $0x80] sm:$0xf]
    %v307 = vld [vmem:[#allocation5 + $0x84] sm:$0xf]
    %v308 = vld [vmem:[#allocation5 + $0x88] sm:$0xf]
    %v309 = vld [vmem:[#allocation5 + $0x8c] sm:$0xf]
    %v310 = vld [vmem:[#allocation7 + $0x4] sm:$0x1]
    %v311 = vlaneseq
    %v312 = vshrl.u32 %v311, 7
    %v313 = vsub.s32 0, %v312
    %v314 = vrot.slane %v310, %v313
    %v331 = vunpack.c.l.b16 %v294
    %v332 = vunpack.c.l.b16 %v295
    %v333 = vunpack.c.l.b16 %v296
    %v334 = vunpack.c.l.b16 %v297
    %v335 = vunpack.c.l.b16 %v298
    %v336 = vunpack.c.l.b16 %v299
    %v337 = vunpack.c.l.b16 %v300
    %v338 = vunpack.c.l.b16 %v301
    %v339 = vunpack.c.l.b16 %v302
    %v340 = vunpack.c.l.b16 %v303
    %v341 = vunpack.c.l.b16 %v304
    %v342 = vunpack.c.l.b16 %v305
    %v343 = vunpack.c.l.b16 %v306
    %v344 = vunpack.c.l.b16 %v307
    %v345 = vunpack.c.l.b16 %v308
    %v346 = vunpack.c.l.b16 %v309
    %v347 = vpack.c.b16 %v332, %v331
    %v348 = vpack.c.b16 %v334, %v333
    %v349 = vpack.c.b16 %v336, %v335
    %v350 = vpack.c.b16 %v338, %v337
    %v351 = vpack.c.b16 %v340, %v339
    %v352 = vpack.c.b16 %v342, %v341
    %v353 = vpack.c.b16 %v344, %v343
    %v354 = vpack.c.b16 %v346, %v345
    %363 = vmatprep.subr.bf16.mxu0 0
    %364 = vmatpush1.bf16.msra.mxu0 %v354
    %365 = vmatprep.subr.bf16.mxu0 0
    %366 = vmatpush1.bf16.msra.mxu0 %v353
    %367 = vmatprep.subr.bf16.mxu0 0
    %368 = vmatpush1.bf16.msra.mxu0 %v352
    %369 = vmatprep.subr.bf16.mxu0 0
    %370 = vmatpush1.bf16.msra.mxu0 %v351
    %371 = vmatprep.subr.bf16.mxu0 0
    %372 = vmatpush1.bf16.msra.mxu0 %v350
    %373 = vmatprep.subr.bf16.mxu0 0
    %374 = vmatpush1.bf16.msra.mxu0 %v349
    %375 = vmatprep.subr.bf16.mxu0 0
    %376 = vmatpush1.bf16.msra.mxu0 %v348
    %377 = vmatprep.subr.bf16.mxu0 0
    %378 = vmatpush1.bf16.msra.mxu0 %v347
    %379 = vmatprep.subr.bf16.mxu0 0
    %380 = vmatpush2.bf16.msra.mxu0 0
    %381 = vmatprep.subr.bf16.mxu0 0
    %382 = vmatpush2.bf16.msra.mxu0 0
    %383 = vmatprep.subr.bf16.mxu0 0
    %384 = vmatpush2.bf16.msra.mxu0 0
    %385 = vmatprep.subr.bf16.mxu0 0
    %386 = vmatpush2.bf16.msra.mxu0 0
    %387 = vmatprep.subr.bf16.mxu0 0
    %388 = vmatpush2.bf16.msra.mxu0 0
    %389 = vmatprep.subr.bf16.mxu0 0
    %390 = vmatpush2.bf16.msra.mxu0 0
    %391 = vmatprep.subr.bf16.mxu0 0
    %392 = vmatpush2.bf16.msra.mxu0 0
    %393 = vmatprep.subr.bf16.mxu0 0
    %394 = vmatpush2.bf16.msra.mxu0 0
    %395 = vmatprep.mubr.bf16.mxu0 0
    %396 = vmatmul.mubr.bf16.gmra.mxu0 %v293
    %v397 = vpop.f32.mrf.mxu0
    %v398 = vadd.f32 %v314, %v397
    %v399 = vpop.f32.mrf.mxu0
    %v400 = vpop.f32.mrf.mxu0
    %v401 = vpop.f32.mrf.mxu0
    %402 = vdwg.mxu0
    %403 = vst [vmem:[#allocation8] sm:$0xff] %v398
    // Predicated region
    $region26: #{net_forward.1} parent=1 // pred_check
      _
    $region27: #{net_forward.1} parent=1 // pred_check_branch
      %405 = sbr.rel (0) target = $region29
    $region28: #{net_forward.1} parent=1 // pred_region
      %s407 = ssub.s32 128, 128
      %408 = vsyncadd [#allocation4], %s407
      %s410 = sshll.u32 [#allocation8], 4
      %s411 = int_to_ptr.vmem [resolvable:$true] %s410
      %413 = dma.vmem_to_hbm [thread:$0]  %s411, 128, %s3, [#allocation4]
    $region29: #{net_forward.1} parent=1 // pred_fallthru
      _
    // Predicated region
    $region30: #{net_forward.1} parent=1 // pred_check
      _
    $region31: #{net_forward.1} parent=1 // pred_check_branch
      %415 = sbr.rel (0) target = $region33
    $region32: #{net_forward.1} parent=1 // pred_region
      %416 = dma.done [#allocation4], 128
    $region33: #{net_forward.1} parent=1 // pred_fallthru
      _
    %417 = vsyncpa [#allocation3], 1
    %418 = vsyncpa [#allocation6], 1
    %419 = vsyncpa [#allocation4], 1

</llo_original>
